<compile_context>
chip_gen: v5e
topology: v5e:2x2
jax: 0.10.0
libtpu: 0.0.40
codegen_flags: <defaults>
</compile_context>

<pallas_src>
import functools

import jax
import jax.numpy as jnp
from jax import lax
from jax.experimental import pallas as pl
from jax.experimental.pallas import tpu as pltpu


def _cdiv(a, b):
    return (a + b - 1) // b


def _round_up(a, b):
    return _cdiv(a, b) * b


def _conv_bn_relu_kernel(*refs, tap_offsets, apply_relu):
    """One grid step: K*K-tap conv GEMM + folded BN affine + ReLU, one store.

    refs = (x_blk_0, ..., x_blk_E, w_ref, scale_ref, shift_ref, o_ref)

    x_blk_s : (1, C_in, T) bf16 lane blocks of the flattened padded activation
              (consecutive blocks of the same array -> the tap halo).
    w_ref   : (K_h*K_w, C_out, C_in) bf16, one matrix per conv tap.
    scale/shift : (C_out, 1) f32 folded BatchNorm (+ bias) affine.
    o_ref   : (1, C_out, T) output block in the final dtype.
    """
    n_xblk = len(refs) - 4
    x_refs = refs[:n_xblk]
    w_ref, scale_ref, shift_ref, o_ref = refs[n_xblk:]
    T = o_ref.shape[-1]

    # Concatenate the consecutive lane blocks once: (C_in, n_xblk * T).
    blocks = [r[0] for r in x_refs]
    x_cat = blocks[0] if n_xblk == 1 else jnp.concatenate(blocks, axis=-1)

    # K*K accumulating MXU matmuls; each tap is a static lane shift of x_cat.
    acc = None
    for t, off in enumerate(tap_offsets):
        x_tap = x_cat[:, off:off + T]                       # (C_in, T), static
        p = jnp.dot(w_ref[t], x_tap, preferred_element_type=jnp.float32)
        acc = p if acc is None else acc + p

    y = acc * scale_ref[...] + shift_ref[...]               # folded BN + bias
    if apply_relu:
        y = jnp.maximum(y, 0.0)
    # Padded / halo lane columns hold garbage that the wrapper slices off;
    # they must stay in the store so it remains a single dense, unmasked vst.
    o_ref[0] = y.astype(o_ref.dtype)


def basic_conv(x, weight, bias, bn_gamma, bn_beta, bn_mean, bn_var, *,
               stride=1, padding=0, dilation=1, groups=1,
               relu=True, bn=True, eps=1e-5,
               lane_tile=512, compute_dtype=jnp.bfloat16):
    """BasicConv.forward: Conv2d -> BatchNorm2d (eval) -> ReLU.

    x: (N, C_in, H, W); weight: (C_out, C_in, K_h, K_w) -> (N, C_out, Ho, Wo).
    """
    # TODO(synk): grouped convolutions (groups > 1) are not implemented.
    assert groups == 1, "groups > 1 not supported"
    N, C_in, H, W = x.shape
    C_out, C_in_w, K_h, K_w = weight.shape
    assert C_in_w == C_in

    s, P, d = int(stride), int(padding), int(dilation)
    out_dtype = x.dtype

    # Stride-1 output geometry; strided convs are subsampled from it below.
    # TODO(synk): stride > 1 computes the stride-1 output and subsamples it
    # (correct but ~stride^2 extra work); a dedicated strided path would avoid
    # that waste.
    H_pad, W_pad = H + 2 * P, W + 2 * P
    H_out1 = H_pad - d * (K_h - 1)
    W_out1 = W_pad - d * (K_w - 1)
    assert H_out1 >= 1 and W_out1 >= 1, "invalid conv geometry"

    # Lanes = row-major flattened padded spatial positions, so every tap is a
    # constant lane shift of one slab.  Lb includes the (K_w-1)*d halo columns
    # per row; they are computed and discarded (keeps stores dense).
    Lb = H_out1 * W_pad
    T = max(128, min(_round_up(lane_tile, 128), _round_up(Lb, 128)))
    # v7x has 2 TensorCores: keep the "parallel" grid at >= 2 steps.
    if N * _cdiv(Lb, T) < 2 and T > 128:
        T = max(128, _round_up(_cdiv(Lb, 2), 128))
    Lb_pad = _round_up(Lb, T)
    n_tiles = Lb_pad // T

    max_off = (K_h - 1) * d * W_pad + (K_w - 1) * d
    n_extra = _cdiv(max_off, T) if max_off > 0 else 0
    In_pad = Lb_pad + n_extra * T            # always >= H_pad * W_pad

    # Activations: spatial zero-pad, flatten HW, pad the tail, cast to bf16.
    # No transpose, no K*K duplication.
    xp = jnp.pad(x.astype(compute_dtype), ((0, 0), (0, 0), (P, P), (P, P)))
    x_flat = xp.reshape(N, C_in, H_pad * W_pad)
    x_flat = jnp.pad(x_flat, ((0, 0), (0, 0), (0, In_pad - H_pad * W_pad)))

    # Weights as a (K_h*K_w, C_out, C_in) stack of per-tap matrices, bf16.
    w_taps = weight.astype(compute_dtype).transpose(2, 3, 0, 1).reshape(
        K_h * K_w, C_out, C_in)
    tap_offsets = tuple(i * d * W_pad + j * d
                        for i in range(K_h) for j in range(K_w))

    # Fold BatchNorm (inference / running stats) + conv bias into a
    # per-output-channel f32 scale/shift applied inside the kernel.
    # TODO(synk): training-mode BatchNorm (batch stats + running-stat update)
    # has no single-pass equivalent here; inference-mode BN is implemented.
    if bn:
        scale = bn_gamma.astype(jnp.float32) / jnp.sqrt(
            bn_var.astype(jnp.float32) + eps)
        shift = bn_beta.astype(jnp.float32) - bn_mean.astype(jnp.float32) * scale
        if bias is not None:
            shift = shift + bias.astype(jnp.float32) * scale
    else:
        scale = jnp.ones((C_out,), jnp.float32)
        shift = (bias.astype(jnp.float32) if bias is not None
                 else jnp.zeros((C_out,), jnp.float32))
    scale = scale.reshape(C_out, 1)
    shift = shift.reshape(C_out, 1)

    itemsize = jnp.dtype(compute_dtype).itemsize
    cost = pl.CostEstimate(
        flops=2 * N * n_tiles * len(tap_offsets) * C_out * C_in * T,
        transcendentals=0,
        bytes_accessed=(N * n_tiles * (1 + n_extra) * C_in * T * itemsize
                        + K_h * K_w * C_out * C_in * itemsize
                        + 2 * C_out * 4
                        + N * Lb_pad * C_out * jnp.dtype(out_dtype).itemsize))

    # 1 + n_extra shifted views of the SAME flattened activation array; the
    # extra block(s) provide the halo needed by the largest tap offset.
    x_specs = [pl.BlockSpec((1, C_in, T), (lambda n, j, sft=sft: (n, 0, j + sft)))
               for sft in range(n_extra + 1)]
    const_specs = [
        pl.BlockSpec((K_h * K_w, C_out, C_in), lambda n, j: (0, 0, 0)),
        pl.BlockSpec((C_out, 1), lambda n, j: (0, 0)),
        pl.BlockSpec((C_out, 1), lambda n, j: (0, 0)),
    ]

    out_flat = pl.pallas_call(
        functools.partial(_conv_bn_relu_kernel,
                          tap_offsets=tap_offsets, apply_relu=relu),
        out_shape=jax.ShapeDtypeStruct((N, C_out, Lb_pad), out_dtype),
        grid_spec=pltpu.PrefetchScalarGridSpec(
            num_scalar_prefetch=0,
            grid=(N, n_tiles),
            in_specs=x_specs + const_specs,
            out_specs=pl.BlockSpec((1, C_out, T), lambda n, j: (n, 0, j)),
        ),
        compiler_params=pltpu.CompilerParams(
            dimension_semantics=("parallel", "parallel"),
            vmem_limit_bytes=48 * 1024 * 1024),
        cost_estimate=cost,
    )(*([x_flat] * (n_extra + 1)), w_taps, scale, shift)

    # Cheap layout cleanup (no transpose): drop padded lanes and halo columns.
    out = out_flat[:, :, :Lb].reshape(N, C_out, H_out1, W_pad)[:, :, :, :W_out1]
    if s > 1:
        out = out[:, :, ::s, ::s]
    return out


if __name__ == "__main__":
    key = jax.random.PRNGKey(0)
    ks = jax.random.split(key, 6)

    # Small shapes consistent with the module.
    N, C_in, H, W = 2, 4, 16, 16
    C_out, K = 8, 3
    stride, padding, dilation = 1, 1, 1

    x = jax.random.normal(ks[0], (N, C_in, H, W), jnp.float32)
    # nn.Conv2d(4, 8, kernel_size=3, padding=1, bias=False) -> (8, 4, 3, 3)
    w = jax.random.normal(ks[1], (C_out, C_in, K, K), jnp.float32) * 0.1
    # BatchNorm2d(8) parameters / running statistics (inference mode).
    gamma = 1.0 + 0.1 * jax.random.normal(ks[2], (C_out,), jnp.float32)
    beta = 0.1 * jax.random.normal(ks[3], (C_out,), jnp.float32)
    r_mean = 0.1 * jax.random.normal(ks[4], (C_out,), jnp.float32)
    r_var = jax.random.uniform(ks[5], (C_out,), jnp.float32,
                               minval=0.5, maxval=1.5)

    out = basic_conv(x, w, None, gamma, beta, r_mean, r_var,
                     stride=stride, padding=padding, dilation=dilation,
                     groups=1, relu=True, bn=True)
    out = jax.block_until_ready(out)

    # Pure-JAX reference of the PyTorch forward (eval-mode BN).  The kernel
    # feeds the MXU in bf16 with f32 accumulation, so quantize the reference's
    # conv operands the same way before an f32 convolution.
    xq = x.astype(jnp.bfloat16).astype(jnp.float32)
    wq = w.astype(jnp.bfloat16).astype(jnp.float32)
    conv = lax.conv_general_dilated(
        xq, wq, window_strides=(stride, stride),
        padding=[(padding, padding), (padding, padding)],
        rhs_dilation=(dilation, dilation),
        dimension_numbers=("NCHW", "OIHW", "NCHW"),
        precision=lax.Precision.HIGHEST)
    ref = (conv - r_mean[None, :, None, None]) / jnp.sqrt(
        r_var[None, :, None, None] + 1e-5)
    ref = ref * gamma[None, :, None, None] + beta[None, :, None, None]
    ref = jnp.maximum(ref, 0.0)

    assert out.shape == ref.shape, (out.shape, ref.shape)
    err = float(jnp.max(jnp.abs(out - ref)))
    assert jnp.allclose(out, ref, atol=5e-3, rtol=5e-3), err
    print("KERNEL_OK")
</pallas_src>

<mosaic_0001>
module attributes {stable_mosaic.version = 11 : i64} {
  func.func @_conv_bn_relu_kernel(%arg0: i32, %arg1: i32, %arg2: memref<1x4x384xbf16, #tpu.memory_space<vmem>>, %arg3: memref<1x4x384xbf16, #tpu.memory_space<vmem>>, %arg4: memref<9x8x4xbf16, #tpu.memory_space<vmem>>, %arg5: memref<8x1xf32, #tpu.memory_space<vmem>>, %arg6: memref<8x1xf32, #tpu.memory_space<vmem>>, %arg7: memref<1x8x384xf32, #tpu.memory_space<vmem>>) attributes {dimension_semantics = [#tpu.dimension_semantics<parallel>, #tpu.dimension_semantics<parallel>], iteration_bounds = array<i64: 2, 1>, scalar_prefetch = 0 : i64, scratch_operands = 0 : i64, tpu.core_type = #tpu.core_type<tc>, window_params = [{transform_indices = @transform_0, window_bounds = array<i64: 1, 4, 384>}, {transform_indices = @transform_1, window_bounds = array<i64: 1, 4, 384>}, {pipeline_mode = #tpu.pipeline_mode<synchronous>, transform_indices = @transform_2, window_bounds = array<i64: 9, 8, 4>}, {pipeline_mode = #tpu.pipeline_mode<synchronous>, transform_indices = @transform_3, window_bounds = array<i64: 8, 1>}, {pipeline_mode = #tpu.pipeline_mode<synchronous>, transform_indices = @transform_4, window_bounds = array<i64: 8, 1>}, {transform_indices = @transform_5, window_bounds = array<i64: 1, 8, 384>}]} {
    %c0 = arith.constant 0 : index
    %c0_0 = arith.constant 0 : index
    %c0_1 = arith.constant 0 : index
    %0 = vector.load %arg2[%c0, %c0_0, %c0_1] : memref<1x4x384xbf16, #tpu.memory_space<vmem>>, vector<1x4x384xbf16>
    %1 = vector.shape_cast %0 : vector<1x4x384xbf16> to vector<4x384xbf16>
    %c0_2 = arith.constant 0 : index
    %c0_3 = arith.constant 0 : index
    %c0_4 = arith.constant 0 : index
    %2 = vector.load %arg3[%c0_2, %c0_3, %c0_4] : memref<1x4x384xbf16, #tpu.memory_space<vmem>>, vector<1x4x384xbf16>
    %3 = vector.shape_cast %2 : vector<1x4x384xbf16> to vector<4x384xbf16>
    %4 = tpu.concatenate %1, %3 in 1 : vector<4x384xbf16>, vector<4x384xbf16> -> vector<4x768xbf16>
    %5 = vector.extract_strided_slice %4 {offsets = [0, 0], sizes = [4, 384], strides = [1, 1]} : vector<4x768xbf16> to vector<4x384xbf16>
    %c0_5 = arith.constant 0 : index
    %c0_6 = arith.constant 0 : index
    %c0_7 = arith.constant 0 : index
    %6 = vector.load %arg4[%c0_5, %c0_6, %c0_7] : memref<9x8x4xbf16, #tpu.memory_space<vmem>>, vector<1x8x4xbf16>
    %7 = vector.shape_cast %6 : vector<1x8x4xbf16> to vector<8x4xbf16>
    %cst = arith.constant dense<0.000000e+00> : vector<8x384xf32>
    %8 = tpu.matmul %7, %5, %cst {dimension_numbers = #tpu.dot_dimension_numbers<[1], [0], [0], [1], [0, 0, 1, 1], [], []>} : vector<8x4xbf16>, vector<4x384xbf16>, vector<8x384xf32> -> vector<8x384xf32>
    %9 = vector.extract_strided_slice %4 {offsets = [0, 1], sizes = [4, 384], strides = [1, 1]} : vector<4x768xbf16> to vector<4x384xbf16>
    %c1 = arith.constant 1 : index
    %c0_8 = arith.constant 0 : index
    %c0_9 = arith.constant 0 : index
    %10 = vector.load %arg4[%c1, %c0_8, %c0_9] : memref<9x8x4xbf16, #tpu.memory_space<vmem>>, vector<1x8x4xbf16>
    %11 = vector.shape_cast %10 : vector<1x8x4xbf16> to vector<8x4xbf16>
    %cst_10 = arith.constant dense<0.000000e+00> : vector<8x384xf32>
    %12 = tpu.matmul %11, %9, %cst_10 {dimension_numbers = #tpu.dot_dimension_numbers<[1], [0], [0], [1], [0, 0, 1, 1], [], []>} : vector<8x4xbf16>, vector<4x384xbf16>, vector<8x384xf32> -> vector<8x384xf32>
    %13 = arith.addf %8, %12 : vector<8x384xf32>
    %14 = vector.extract_strided_slice %4 {offsets = [0, 2], sizes = [4, 384], strides = [1, 1]} : vector<4x768xbf16> to vector<4x384xbf16>
    %c2 = arith.constant 2 : index
    %c0_11 = arith.constant 0 : index
    %c0_12 = arith.constant 0 : index
    %15 = vector.load %arg4[%c2, %c0_11, %c0_12] : memref<9x8x4xbf16, #tpu.memory_space<vmem>>, vector<1x8x4xbf16>
    %16 = vector.shape_cast %15 : vector<1x8x4xbf16> to vector<8x4xbf16>
    %cst_13 = arith.constant dense<0.000000e+00> : vector<8x384xf32>
    %17 = tpu.matmul %16, %14, %cst_13 {dimension_numbers = #tpu.dot_dimension_numbers<[1], [0], [0], [1], [0, 0, 1, 1], [], []>} : vector<8x4xbf16>, vector<4x384xbf16>, vector<8x384xf32> -> vector<8x384xf32>
    %18 = arith.addf %13, %17 : vector<8x384xf32>
    %19 = vector.extract_strided_slice %4 {offsets = [0, 18], sizes = [4, 384], strides = [1, 1]} : vector<4x768xbf16> to vector<4x384xbf16>
    %c3 = arith.constant 3 : index
    %c0_14 = arith.constant 0 : index
    %c0_15 = arith.constant 0 : index
    %20 = vector.load %arg4[%c3, %c0_14, %c0_15] : memref<9x8x4xbf16, #tpu.memory_space<vmem>>, vector<1x8x4xbf16>
    %21 = vector.shape_cast %20 : vector<1x8x4xbf16> to vector<8x4xbf16>
    %cst_16 = arith.constant dense<0.000000e+00> : vector<8x384xf32>
    %22 = tpu.matmul %21, %19, %cst_16 {dimension_numbers = #tpu.dot_dimension_numbers<[1], [0], [0], [1], [0, 0, 1, 1], [], []>} : vector<8x4xbf16>, vector<4x384xbf16>, vector<8x384xf32> -> vector<8x384xf32>
    %23 = arith.addf %18, %22 : vector<8x384xf32>
    %24 = vector.extract_strided_slice %4 {offsets = [0, 19], sizes = [4, 384], strides = [1, 1]} : vector<4x768xbf16> to vector<4x384xbf16>
    %c4 = arith.constant 4 : index
    %c0_17 = arith.constant 0 : index
    %c0_18 = arith.constant 0 : index
    %25 = vector.load %arg4[%c4, %c0_17, %c0_18] : memref<9x8x4xbf16, #tpu.memory_space<vmem>>, vector<1x8x4xbf16>
    %26 = vector.shape_cast %25 : vector<1x8x4xbf16> to vector<8x4xbf16>
    %cst_19 = arith.constant dense<0.000000e+00> : vector<8x384xf32>
    %27 = tpu.matmul %26, %24, %cst_19 {dimension_numbers = #tpu.dot_dimension_numbers<[1], [0], [0], [1], [0, 0, 1, 1], [], []>} : vector<8x4xbf16>, vector<4x384xbf16>, vector<8x384xf32> -> vector<8x384xf32>
    %28 = arith.addf %23, %27 : vector<8x384xf32>
    %29 = vector.extract_strided_slice %4 {offsets = [0, 20], sizes = [4, 384], strides = [1, 1]} : vector<4x768xbf16> to vector<4x384xbf16>
    %c5 = arith.constant 5 : index
    %c0_20 = arith.constant 0 : index
    %c0_21 = arith.constant 0 : index
    %30 = vector.load %arg4[%c5, %c0_20, %c0_21] : memref<9x8x4xbf16, #tpu.memory_space<vmem>>, vector<1x8x4xbf16>
    %31 = vector.shape_cast %30 : vector<1x8x4xbf16> to vector<8x4xbf16>
    %cst_22 = arith.constant dense<0.000000e+00> : vector<8x384xf32>
    %32 = tpu.matmul %31, %29, %cst_22 {dimension_numbers = #tpu.dot_dimension_numbers<[1], [0], [0], [1], [0, 0, 1, 1], [], []>} : vector<8x4xbf16>, vector<4x384xbf16>, vector<8x384xf32> -> vector<8x384xf32>
    %33 = arith.addf %28, %32 : vector<8x384xf32>
    %34 = vector.extract_strided_slice %4 {offsets = [0, 36], sizes = [4, 384], strides = [1, 1]} : vector<4x768xbf16> to vector<4x384xbf16>
    %c6 = arith.constant 6 : index
    %c0_23 = arith.constant 0 : index
    %c0_24 = arith.constant 0 : index
    %35 = vector.load %arg4[%c6, %c0_23, %c0_24] : memref<9x8x4xbf16, #tpu.memory_space<vmem>>, vector<1x8x4xbf16>
    %36 = vector.shape_cast %35 : vector<1x8x4xbf16> to vector<8x4xbf16>
    %cst_25 = arith.constant dense<0.000000e+00> : vector<8x384xf32>
    %37 = tpu.matmul %36, %34, %cst_25 {dimension_numbers = #tpu.dot_dimension_numbers<[1], [0], [0], [1], [0, 0, 1, 1], [], []>} : vector<8x4xbf16>, vector<4x384xbf16>, vector<8x384xf32> -> vector<8x384xf32>
    %38 = arith.addf %33, %37 : vector<8x384xf32>
    %39 = vector.extract_strided_slice %4 {offsets = [0, 37], sizes = [4, 384], strides = [1, 1]} : vector<4x768xbf16> to vector<4x384xbf16>
    %c7 = arith.constant 7 : index
    %c0_26 = arith.constant 0 : index
    %c0_27 = arith.constant 0 : index
    %40 = vector.load %arg4[%c7, %c0_26, %c0_27] : memref<9x8x4xbf16, #tpu.memory_space<vmem>>, vector<1x8x4xbf16>
    %41 = vector.shape_cast %40 : vector<1x8x4xbf16> to vector<8x4xbf16>
    %cst_28 = arith.constant dense<0.000000e+00> : vector<8x384xf32>
    %42 = tpu.matmul %41, %39, %cst_28 {dimension_numbers = #tpu.dot_dimension_numbers<[1], [0], [0], [1], [0, 0, 1, 1], [], []>} : vector<8x4xbf16>, vector<4x384xbf16>, vector<8x384xf32> -> vector<8x384xf32>
    %43 = arith.addf %38, %42 : vector<8x384xf32>
    %44 = vector.extract_strided_slice %4 {offsets = [0, 38], sizes = [4, 384], strides = [1, 1]} : vector<4x768xbf16> to vector<4x384xbf16>
    %c8 = arith.constant 8 : index
    %c0_29 = arith.constant 0 : index
    %c0_30 = arith.constant 0 : index
    %45 = vector.load %arg4[%c8, %c0_29, %c0_30] : memref<9x8x4xbf16, #tpu.memory_space<vmem>>, vector<1x8x4xbf16>
    %46 = vector.shape_cast %45 : vector<1x8x4xbf16> to vector<8x4xbf16>
    %cst_31 = arith.constant dense<0.000000e+00> : vector<8x384xf32>
    %47 = tpu.matmul %46, %44, %cst_31 {dimension_numbers = #tpu.dot_dimension_numbers<[1], [0], [0], [1], [0, 0, 1, 1], [], []>} : vector<8x4xbf16>, vector<4x384xbf16>, vector<8x384xf32> -> vector<8x384xf32>
    %48 = arith.addf %43, %47 : vector<8x384xf32>
    %c0_32 = arith.constant 0 : index
    %c0_33 = arith.constant 0 : index
    %49 = vector.load %arg5[%c0_32, %c0_33] : memref<8x1xf32, #tpu.memory_space<vmem>>, vector<8x1xf32>
    %50 = vector.broadcast %49 : vector<8x1xf32> to vector<8x384xf32>
    %51 = arith.mulf %48, %50 : vector<8x384xf32>
    %c0_34 = arith.constant 0 : index
    %c0_35 = arith.constant 0 : index
    %52 = vector.load %arg6[%c0_34, %c0_35] : memref<8x1xf32, #tpu.memory_space<vmem>>, vector<8x1xf32>
    %53 = vector.broadcast %52 : vector<8x1xf32> to vector<8x384xf32>
    %54 = arith.addf %51, %53 : vector<8x384xf32>
    %cst_36 = arith.constant 0.000000e+00 : f32
    %55 = vector.broadcast %cst_36 : f32 to vector<8x384xf32>
    %56 = arith.maximumf %54, %55 : vector<8x384xf32>
    %c0_37 = arith.constant 0 : index
    %c0_38 = arith.constant 0 : index
    %c0_39 = arith.constant 0 : index
    %57 = vector.load %arg7[%c0_37, %c0_38, %c0_39] : memref<1x8x384xf32, #tpu.memory_space<vmem>>, vector<1x8x384xf32>
    %58 = vector.shape_cast %57 : vector<1x8x384xf32> to vector<8x384xf32>
    %59 = vector.shape_cast %56 : vector<8x384xf32> to vector<1x8x384xf32>
    tpu.vector_store %arg7[%c0_37, %c0_38, %c0_39], %59 {strides = array<i32>} : memref<1x8x384xf32, #tpu.memory_space<vmem>>, vector<1x8x384xf32>,
    return
  }
  func.func @transform_0(%arg0: i32, %arg1: i32) -> (i32, i32, i32) {
    %c0_i32 = arith.constant 0 : i32
    %0 = arith.addi %arg1, %c0_i32 : i32
    %c0_i32_0 = arith.constant 0 : i32
    %c0_i32_1 = arith.constant 0 : i32
    return %arg0, %c0_i32_0, %0 : i32, i32, i32
  }
  func.func @transform_1(%arg0: i32, %arg1: i32) -> (i32, i32, i32) {
    %c1_i32 = arith.constant 1 : i32
    %0 = arith.addi %arg1, %c1_i32 : i32
    %c0_i32 = arith.constant 0 : i32
    %c0_i32_0 = arith.constant 0 : i32
    return %arg0, %c0_i32, %0 : i32, i32, i32
  }
  func.func @transform_2(%arg0: i32, %arg1: i32) -> (i32, i32, i32) {
    %c0_i32 = arith.constant 0 : i32
    %c0_i32_0 = arith.constant 0 : i32
    %c0_i32_1 = arith.constant 0 : i32
    %c0_i32_2 = arith.constant 0 : i32
    return %c0_i32, %c0_i32_0, %c0_i32_1 : i32, i32, i32
  }
  func.func @transform_3(%arg0: i32, %arg1: i32) -> (i32, i32) {
    %c0_i32 = arith.constant 0 : i32
    %c0_i32_0 = arith.constant 0 : i32
    %c0_i32_1 = arith.constant 0 : i32
    return %c0_i32, %c0_i32_0 : i32, i32
  }
  func.func @transform_4(%arg0: i32, %arg1: i32) -> (i32, i32) {
    %c0_i32 = arith.constant 0 : i32
    %c0_i32_0 = arith.constant 0 : i32
    %c0_i32_1 = arith.constant 0 : i32
    return %c0_i32, %c0_i32_0 : i32, i32
  }
  func.func @transform_5(%arg0: i32, %arg1: i32) -> (i32, i32, i32) {
    %c0_i32 = arith.constant 0 : i32
    %c0_i32_0 = arith.constant 0 : i32
    return %arg0, %c0_i32, %arg1 : i32, i32, i32
  }
}

</mosaic_0001>

<llo_original>
// kernel: tpu_custom_call.1
$region0: #{tpu_custom_call.1}
  #allocation0 [shape = 'u32[]', space=smem, size = 0x4, offset = 0x4, fixed_abs, tag = 'smem constant byte address 0x4 - core index']
  #allocation1 [shape = 'u32[72,128]{1,0:T(1,128)}', space=vmem, size = 0x9000, scoped, tag = 'internal scratch']
  %s0 = inlined_call_operand.vmem [shape: bf16[2,4,768], index: 0, kind: input, shape index: {}]
  %s1 = inlined_call_operand.vmem [shape: bf16[2,4,768], index: 1, kind: input, shape index: {}]
  %s2 = inlined_call_operand.vmem [shape: bf16[9,8,4], index: 2, kind: input, shape index: {}]
  %s3 = inlined_call_operand.vmem [shape: f32[8,1], index: 3, kind: input, shape index: {}]
  %s4 = inlined_call_operand.vmem [shape: f32[8,1], index: 4, kind: input, shape index: {}]
  %s5 = inlined_call_operand.hbm [shape: f32[2,8,384], index: 5, kind: output, shape index: {}]
  %s6 = sld [smem:[#allocation0]]
  $region53: #{tpu_custom_call.1} parent=0
    _
  %s8 = ssub.s32 1, %s6
  %s9 = scalar_select 0, %s8, %s6
  $region1: #{tpu_custom_call.1} parent=0
    #allocation2 [shape = 'u8[24576]{0}', space=vmem, size = 0x6000, scoped, tag = 'output window, operand 0']
    #allocation3 [shape = 's32[2]{0}', space=sflag, size = 0x8, scoped, tag = 'scoped memory for tpu_custom_call.1']
    %10 = vsyncpa [#allocation3], 0
    %s11 = scalar_lea.sflag [#allocation3], 1
    %12 = vsyncpa %s11, 0
    loop: start=0, step=1, limit=4
    $region2: #{tpu_custom_call.1} parent=1 // loop_pre_header
      _
    $region3: #{tpu_custom_call.1} parent=1 // loop_header
      %s14 = sphi 0, %s18
      %p15 = scmp.ge.s32.totalorder %s14, 4
      %s21 = sphi 0, %s33
      %s22 = sphi 0, %s29
      %s23 = sphi 0, %s21
      %s24 = sphi 0, %s22
      %s25 = sphi 0, %s23
      %s26 = sphi 0, %s24
      %s38 = sphi 0, %s40
      %s41 = sphi 0, %s38
      %s42 = sphi 0, %s41
      %s58 = sphi 0, %s42
      %s68 = sphi 0, %s70
      %s71 = sphi 0, %s68
      %s72 = sphi 0, %s71
      %s88 = sphi 0, %s72
      %s92 = sphi 0, %s92
      %s94 = sphi 0, %s92
      %s95 = sphi 0, %s94
      %s109 = sphi 0, %s95
      %s113 = sphi 0, %s113
      %s115 = sphi 0, %s113
      %s116 = sphi 0, %s115
      %s130 = sphi 0, %s116
      %s134 = sphi 0, %s134
      %s136 = sphi 0, %s134
      %s137 = sphi 0, %s136
      %s151 = sphi 0, %s137
      %s159 = sphi 0, %s161
      %s162 = sphi 0, %s159
      %s163 = sphi 0, %s162
      %s179 = sphi 0, %s163
    $region4: #{tpu_custom_call.1} parent=1 // loop_header_branch
      %17 = sbr.rel (%p15) target = $region8
    $region5: #{tpu_custom_call.1} parent=1 // loop_body
      %s19 = ssub.s32 %s14, 1
      %s20 = ssub.s32 %s14, 2
      %s27 = sadd.s32 1, %s22
      %p28 = scmp.ge.s32.totalorder %s27, 1
      %s29 = scalar_select %p28, 0, %s27
      %s30 = sadd.s32 1, %s21
      %s31 = scalar_select %p28, %s30, %s21
      %p32 = scmp.ge.s32.totalorder %s31, 2
      %s33 = scalar_select %p32, 0, %s31
      %s34 = ssub.s32 %s21, %s33
      %s35 = ssub.s32 %s22, %s29
      %s36 = sor.u32 %s34, %s35
      %p37 = scmp.eq.s32.totalorder %s36, 0
      %s39 = sadd.s32 %s38, 1
      %s40 = scalar_select %p37, %s38, %s39
      %p43 = pneg %p37
      %p44 = scmp.eq.s32.totalorder %s14, 1
      %p45 = por %p43, %p44
      %p46 = scmp.ne.s32.totalorder %s38, %s41
      %p47 = scmp.eq.s32.totalorder %s14, 0
      %p48 = por %p46, %p47
      %p49 = scmp.ne.s32.totalorder %s38, %s41
      %p50 = scmp.eq.s32.totalorder %s19, 1
      %p51 = por %p49, %p50
      %p52 = scmp.ne.s32.totalorder %s41, %s42
      %p53 = scmp.eq.s32.totalorder %s19, 0
      %p54 = por %p52, %p53
      %p55 = scmp.ne.s32.totalorder %s41, %s42
      %p56 = scmp.eq.s32.totalorder %s20, 1
      %p57 = por %p55, %p56
      %p59 = scmp.ne.s32.totalorder %s42, %s58
      %p60 = scmp.eq.s32.totalorder %s20, 0
      %p61 = por %p59, %p60
      %s62 = sadd.s32 %s22, 1
      %s63 = sadd.s32 %s29, 1
      %s64 = ssub.s32 %s21, %s33
      %s65 = ssub.s32 %s62, %s63
      %s66 = sor.u32 %s64, %s65
      %p67 = scmp.eq.s32.totalorder %s66, 0
      %s69 = sadd.s32 %s68, 1
      %s70 = scalar_select %p67, %s68, %s69
      %p73 = pneg %p67
      %p74 = scmp.eq.s32.totalorder %s14, 1
      %p75 = por %p73, %p74
      %p76 = scmp.ne.s32.totalorder %s68, %s71
      %p77 = scmp.eq.s32.totalorder %s14, 0
      %p78 = por %p76, %p77
      %p79 = scmp.ne.s32.totalorder %s68, %s71
      %p80 = scmp.eq.s32.totalorder %s19, 1
      %p81 = por %p79, %p80
      %p82 = scmp.ne.s32.totalorder %s71, %s72
      %p83 = scmp.eq.s32.totalorder %s19, 0
      %p84 = por %p82, %p83
      %p85 = scmp.ne.s32.totalorder %s71, %s72
      %p86 = scmp.eq.s32.totalorder %s20, 1
      %p87 = por %p85, %p86
      %p89 = scmp.ne.s32.totalorder %s72, %s88
      %p90 = scmp.eq.s32.totalorder %s20, 0
      %p91 = por %p89, %p90
      %s93 = sadd.s32 %s92, 1
      %p96 = scmp.eq.s32.totalorder %s14, 1
      %p97 = scmp.ne.s32.totalorder %s92, %s94
      %p98 = scmp.eq.s32.totalorder %s14, 0
      %p99 = por %p97, %p98
      %p100 = scmp.ne.s32.totalorder %s92, %s94
      %p101 = scmp.eq.s32.totalorder %s19, 1
      %p102 = por %p100, %p101
      %p103 = scmp.ne.s32.totalorder %s94, %s95
      %p104 = scmp.eq.s32.totalorder %s19, 0
      %p105 = por %p103, %p104
      %p106 = scmp.ne.s32.totalorder %s94, %s95
      %p107 = scmp.eq.s32.totalorder %s20, 1
      %p108 = por %p106, %p107
      %p110 = scmp.ne.s32.totalorder %s95, %s109
      %p111 = scmp.eq.s32.totalorder %s20, 0
      %p112 = por %p110, %p111
      %s114 = sadd.s32 %s113, 1
      %p117 = scmp.eq.s32.totalorder %s14, 1
      %p118 = scmp.ne.s32.totalorder %s113, %s115
      %p119 = scmp.eq.s32.totalorder %s14, 0
      %p120 = por %p118, %p119
      %p121 = scmp.ne.s32.totalorder %s113, %s115
      %p122 = scmp.eq.s32.totalorder %s19, 1
      %p123 = por %p121, %p122
      %p124 = scmp.ne.s32.totalorder %s115, %s116
      %p125 = scmp.eq.s32.totalorder %s19, 0
      %p126 = por %p124, %p125
      %p127 = scmp.ne.s32.totalorder %s115, %s116
      %p128 = scmp.eq.s32.totalorder %s20, 1
      %p129 = por %p127, %p128
      %p131 = scmp.ne.s32.totalorder %s116, %s130
      %p132 = scmp.eq.s32.totalorder %s20, 0
      %p133 = por %p131, %p132
      %s135 = sadd.s32 %s134, 1
      %p138 = scmp.eq.s32.totalorder %s14, 1
      %p139 = scmp.ne.s32.totalorder %s134, %s136
      %p140 = scmp.eq.s32.totalorder %s14, 0
      %p141 = por %p139, %p140
      %p142 = scmp.ne.s32.totalorder %s134, %s136
      %p143 = scmp.eq.s32.totalorder %s19, 1
      %p144 = por %p142, %p143
      %p145 = scmp.ne.s32.totalorder %s136, %s137
      %p146 = scmp.eq.s32.totalorder %s19, 0
      %p147 = por %p145, %p146
      %p148 = scmp.ne.s32.totalorder %s136, %s137
      %p149 = scmp.eq.s32.totalorder %s20, 1
      %p150 = por %p148, %p149
      %p152 = scmp.ne.s32.totalorder %s137, %s151
      %p153 = scmp.eq.s32.totalorder %s20, 0
      %p154 = por %p152, %p153
      %s155 = ssub.s32 %s21, %s33
      %s156 = ssub.s32 %s22, %s29
      %s157 = sor.u32 %s155, %s156
      %p158 = scmp.eq.s32.totalorder %s157, 0
      %s160 = sadd.s32 %s159, 1
      %s161 = scalar_select %p158, %s159, %s160
      %p164 = pneg %p158
      %p165 = scmp.eq.s32.totalorder %s14, 1
      %p166 = por %p164, %p165
      %p167 = scmp.ne.s32.totalorder %s159, %s162
      %p168 = scmp.eq.s32.totalorder %s14, 0
      %p169 = por %p167, %p168
      %p170 = scmp.ne.s32.totalorder %s159, %s162
      %p171 = scmp.eq.s32.totalorder %s19, 1
      %p172 = por %p170, %p171
      %p173 = scmp.ne.s32.totalorder %s162, %s163
      %p174 = scmp.eq.s32.totalorder %s19, 0
      %p175 = por %p173, %p174
      %p176 = scmp.ne.s32.totalorder %s162, %s163
      %p177 = scmp.eq.s32.totalorder %s20, 1
      %p178 = por %p176, %p177
      %p180 = scmp.ne.s32.totalorder %s163, %s179
      %p181 = scmp.eq.s32.totalorder %s20, 0
      %p182 = por %p180, %p181
      %p183 = scmp.le.s32.totalorder 1, %s14
      %p184 = scmp.lt.s32.totalorder %s14, 3
      %p185 = pnand %p183, %p184
      %p186 = pneg %p185
      // Predicated region
      $region9: #{tpu_custom_call.1} parent=5 // pred_check
        _
      $region10: #{tpu_custom_call.1} parent=5 // pred_check_branch
        %188 = sbr.rel (%p185) target = $region12
      $region11: #{tpu_custom_call.1} parent=5 // pred_region
        %s189 = ssub.s32 %s14, 1
        // Predicated region
        $region13: #{tpu_custom_call.1} parent=11 // pred_check
          %p190 = pneg %p105
        $region14: #{tpu_custom_call.1} parent=11 // pred_check_branch
          %192 = sbr.rel (%p190) target = $region16
        $region15: #{tpu_custom_call.1} parent=11 // pred_region
          _
        $region16: #{tpu_custom_call.1} parent=11 // pred_fallthru
          _
        // Predicated region
        $region17: #{tpu_custom_call.1} parent=11 // pred_check
          %p193 = pneg %p126
        $region18: #{tpu_custom_call.1} parent=11 // pred_check_branch
          %195 = sbr.rel (%p193) target = $region20
        $region19: #{tpu_custom_call.1} parent=11 // pred_region
          _
        $region20: #{tpu_custom_call.1} parent=11 // pred_fallthru
          _
        // Predicated region
        $region21: #{tpu_custom_call.1} parent=11 // pred_check
          %p196 = pneg %p147
        $region22: #{tpu_custom_call.1} parent=11 // pred_check_branch
          %198 = sbr.rel (%p196) target = $region24
        $region23: #{tpu_custom_call.1} parent=11 // pred_region
          _
        $region24: #{tpu_custom_call.1} parent=11 // pred_fallthru
          _
      $region12: #{tpu_custom_call.1} parent=5 // pred_fallthru
        _
      %p199 = scmp.lt.s32.totalorder %s14, 2
      // Predicated region
      $region25: #{tpu_custom_call.1} parent=5 // pred_check
        %p200 = pneg %p199
      $region26: #{tpu_custom_call.1} parent=5 // pred_check_branch
        %202 = sbr.rel (%p200) target = $region28
      $region27: #{tpu_custom_call.1} parent=5 // pred_region
        // Predicated region
        $region29: #{tpu_custom_call.1} parent=27 // pred_check
          %p203 = pneg %p48
        $region30: #{tpu_custom_call.1} parent=27 // pred_check_branch
          %205 = sbr.rel (%p203) target = $region32
        $region31: #{tpu_custom_call.1} parent=27 // pred_region
          %s206 = smul.u32 3, %s22
          %p207 = scmp.lt.s32.totalorder %s21, 1
          %s208 = scalar_select %p207, %s21, 1
          %p209 = scmp.lt.s32.totalorder %s206, 5
          %s210 = scalar_select %p209, %s206, 5
          %s211 = smul.addr %s208, 6
          %s212 = sadd.s32 %s210, %s211
          %s213 = smul.addr %s212, 2
          %s214 = scalar_lea.vmem %s0, %s213
          %s215 = smul.u32 3, %s22
        $region32: #{tpu_custom_call.1} parent=27 // pred_fallthru
          _
        // Predicated region
        $region33: #{tpu_custom_call.1} parent=27 // pred_check
          %p216 = pneg %p78
        $region34: #{tpu_custom_call.1} parent=27 // pred_check_branch
          %218 = sbr.rel (%p216) target = $region36
        $region35: #{tpu_custom_call.1} parent=27 // pred_region
          %s219 = sadd.s32 %s22, 1
          %s220 = smul.u32 3, %s219
          %p221 = scmp.lt.s32.totalorder %s21, 1
          %s222 = scalar_select %p221, %s21, 1
          %p223 = scmp.lt.s32.totalorder %s220, 5
          %s224 = scalar_select %p223, %s220, 5
          %s225 = smul.addr %s222, 6
          %s226 = sadd.s32 %s224, %s225
          %s227 = smul.addr %s226, 2
          %s228 = scalar_lea.vmem %s1, %s227
          %s229 = sadd.s32 %s22, 1
          %s230 = smul.u32 3, %s229
        $region36: #{tpu_custom_call.1} parent=27 // pred_fallthru
          _
      $region28: #{tpu_custom_call.1} parent=5 // pred_fallthru
        _
      %p231 = scmp.le.s32.totalorder 1, %s14
      %p232 = scmp.lt.s32.totalorder %s14, 3
      %p233 = pnand %p231, %p232
      %p234 = pneg %p233
      // Predicated region
      $region37: #{tpu_custom_call.1} parent=5 // pred_check
        _
      $region38: #{tpu_custom_call.1} parent=5 // pred_check_branch
        %236 = sbr.rel (%p233) target = $region40
      $region39: #{tpu_custom_call.1} parent=5 // pred_region
        %s237 = ssub.s32 %s14, 1
        %s238 = smul.u32 3, %s24
        %p239 = scmp.lt.s32.totalorder %s23, 1
        %s240 = scalar_select %p239, %s23, 1
        %p241 = scmp.lt.s32.totalorder %s238, 5
        %s242 = scalar_select %p241, %s238, 5
        %s243 = smul.addr %s240, 6
        %s244 = sadd.s32 %s242, %s243
        %s245 = smul.addr %s244, 2
        %s246 = scalar_lea.vmem %s0, %s245
        %p247 = pneg %p54
        %p248 = pneg %p51
        %s249 = sadd.s32 %s24, 1
        %s250 = smul.u32 3, %s249
        %p251 = scmp.lt.s32.totalorder %s23, 1
        %s252 = scalar_select %p251, %s23, 1
        %p253 = scmp.lt.s32.totalorder %s250, 5
        %s254 = scalar_select %p253, %s250, 5
        %s255 = smul.addr %s252, 6
        %s256 = sadd.s32 %s254, %s255
        %s257 = smul.addr %s256, 2
        %s258 = scalar_lea.vmem %s1, %s257
        %p259 = pneg %p84
        %p260 = pneg %p81
        %p261 = pneg %p105
        %p262 = pneg %p102
        %p263 = pneg %p126
        %p264 = pneg %p123
        %p265 = pneg %p147
        %p266 = pneg %p144
        %p267 = pneg %p175
        %p268 = pneg %p172
        %s269 = sand.u32 %s162, 1
        %s270 = scalar_lea.sflag [#allocation3], %s269
        %s271 = sand.u32 %s162, 1
        %s272 = smul.addr %s271, 24
        %s273 = scalar_lea.vmem [#allocation2], %s272
        %s274 = smul.u32 3, %s24
        %p275 = scmp.lt.s32.totalorder %s23, 1
        %s276 = scalar_select %p275, %s23, 1
        %p277 = scmp.lt.s32.totalorder %s274, 5
        %s278 = scalar_select %p277, %s274, 5
        %s279 = smul.addr %s276, 6
        %s280 = sadd.s32 %s278, %s279
        %s281 = smul.addr %s280, 2
        %s282 = scalar_lea.vmem %s0, %s281
        %s283 = smul.u32 3, %s24
        %s284 = sadd.s32 %s24, 1
        %s285 = smul.u32 3, %s284
        %p286 = scmp.lt.s32.totalorder %s23, 1
        %s287 = scalar_select %p286, %s23, 1
        %p288 = scmp.lt.s32.totalorder %s285, 5
        %s289 = scalar_select %p288, %s285, 5
        %s290 = smul.addr %s287, 6
        %s291 = sadd.s32 %s289, %s290
        %s292 = smul.addr %s291, 2
        %s293 = scalar_lea.vmem %s1, %s292
        %s294 = sadd.s32 %s24, 1
        %s295 = smul.u32 3, %s294
        %s296 = smul.u32 3, %s24
        %v298 = vld [vmem:[%s282] sm:$0x3f]
        %v299 = vld [vmem:[%s293] sm:$0x3f]
        %301 = vst [vmem:[#allocation1] ss:$4 sm:$0xff] %v298
        %v302 = vld.sshfl [vmem:[#allocation1] sm:$0xff pattern:$0x73625140]
        %v304 = vld.sshfl [vmem:[#allocation1 + $0x8] sm:$0xff pattern:$0x73625140]
        %v306 = vld.sshfl [vmem:[#allocation1 + $0x10] sm:$0xff pattern:$0x73625140]
        %309 = vst [vmem:[#allocation1] ss:$4 sm:$0xff] %v299
        %v310 = vld.sshfl [vmem:[#allocation1] sm:$0xff pattern:$0x73625140]
        %v312 = vld [vmem:[%s2] sm:$0xf]
        %s313 = scalar_lea.vmem %s2, 4
        %v314 = vld [vmem:[%s313] sm:$0xf]
        %315 = vrot.lane.b32.xlu0 %v302, 127
        %v316 = vpop.permute.xlu0 %315
        %317 = vrot.lane.b32.xlu0 %v304, 127
        %v318 = vpop.permute.xlu0 %317
        %319 = vrot.lane.b32.xlu0 %v306, 127
        %v320 = vpop.permute.xlu0 %319
        %321 = vrot.lane.b32.xlu0 %v310, 127
        %v322 = vpop.permute.xlu0 %321
        %vm323 = vcmask 1039360
        %v324 = vsel %vm323, %v316, %v318
        %v325 = vsel %vm323, %v318, %v320
        %v326 = vsel %vm323, %v320, %v322
        %vm327 = vcmask 31744
        %v329 = vsel %vm327, %v314, 0
        %vm331 = vcmask 1041408
        %v333 = vsel %vm331, %v324, 0
        %v336 = vsel %vm331, %v325, 0
        %v339 = vsel %vm331, %v326, 0
        %341 = vmatpush.bf16.msra.mxu0 0
        %342 = vmatpush.bf16.msra.mxu0 0
        %343 = vmatpush.bf16.msra.mxu0 0
        %344 = vmatpush.bf16.msra.mxu0 0
        %345 = vmatpush.bf16.msra.mxu0 0
        %346 = vmatpush.bf16.msra.mxu0 0
        %347 = vmatpush.bf16.msra.mxu0 0
        %348 = vmatpush.bf16.msra.mxu0 %v333
        %349 = vmatmul.bf16.gmra.mxu0 %v329
        %v350 = vpop.f32.mrf.mxu0
        %v351 = vadd.f32 0.0, %v350
        %v352 = vpop.f32.mrf.mxu0
        %353 = vdwg.mxu0
        %354 = vmatpush.bf16.msra.mxu0 0
        %355 = vmatpush.bf16.msra.mxu0 0
        %356 = vmatpush.bf16.msra.mxu0 0
        %357 = vmatpush.bf16.msra.mxu0 0
        %358 = vmatpush.bf16.msra.mxu0 0
        %359 = vmatpush.bf16.msra.mxu0 0
        %360 = vmatpush.bf16.msra.mxu0 0
        %361 = vmatpush.bf16.msra.mxu0 %v336
        %362 = vmatmul.bf16.gmra.mxu0 %v329
        %v363 = vpop.f32.mrf.mxu0
        %v364 = vadd.f32 0.0, %v363
        %v365 = vpop.f32.mrf.mxu0
        %366 = vdwg.mxu0
        %367 = vmatpush.bf16.msra.mxu0 0
        %368 = vmatpush.bf16.msra.mxu0 0
        %369 = vmatpush.bf16.msra.mxu0 0
        %370 = vmatpush.bf16.msra.mxu0 0
        %371 = vmatpush.bf16.msra.mxu0 0
        %372 = vmatpush.bf16.msra.mxu0 0
        %373 = vmatpush.bf16.msra.mxu0 0
        %374 = vmatpush.bf16.msra.mxu0 %v339
        %375 = vmatmul.bf16.gmra.mxu0 %v329
        %v376 = vpop.f32.mrf.mxu0
        %v377 = vadd.f32 0.0, %v376
        %v378 = vpop.f32.mrf.mxu0
        %379 = vdwg.mxu0
        %v381 = vsel %vm327, %v312, 0
        %v383 = vsel %vm331, %v302, 0
        %v385 = vsel %vm331, %v304, 0
        %v387 = vsel %vm331, %v306, 0
        %389 = vmatpush.bf16.msra.mxu0 0
        %390 = vmatpush.bf16.msra.mxu0 0
        %391 = vmatpush.bf16.msra.mxu0 0
        %392 = vmatpush.bf16.msra.mxu0 0
        %393 = vmatpush.bf16.msra.mxu0 0
        %394 = vmatpush.bf16.msra.mxu0 0
        %395 = vmatpush.bf16.msra.mxu0 0
        %396 = vmatpush.bf16.msra.mxu0 %v383
        %397 = vmatmul.bf16.gmra.mxu0 %v381
        %v398 = vpop.f32.mrf.mxu0
        %v399 = vadd.f32 %v351, %v398
        %v400 = vpop.f32.mrf.mxu0
        %401 = vdwg.mxu0
        %402 = vmatpush.bf16.msra.mxu0 0
        %403 = vmatpush.bf16.msra.mxu0 0
        %404 = vmatpush.bf16.msra.mxu0 0
        %405 = vmatpush.bf16.msra.mxu0 0
        %406 = vmatpush.bf16.msra.mxu0 0
        %407 = vmatpush.bf16.msra.mxu0 0
        %408 = vmatpush.bf16.msra.mxu0 0
        %409 = vmatpush.bf16.msra.mxu0 %v385
        %410 = vmatmul.bf16.gmra.mxu0 %v381
        %v411 = vpop.f32.mrf.mxu0
        %v412 = vadd.f32 %v364, %v411
        %v413 = vpop.f32.mrf.mxu0
        %414 = vdwg.mxu0
        %415 = vmatpush.bf16.msra.mxu0 0
        %416 = vmatpush.bf16.msra.mxu0 0
        %417 = vmatpush.bf16.msra.mxu0 0
        %418 = vmatpush.bf16.msra.mxu0 0
        %419 = vmatpush.bf16.msra.mxu0 0
        %420 = vmatpush.bf16.msra.mxu0 0
        %421 = vmatpush.bf16.msra.mxu0 0
        %422 = vmatpush.bf16.msra.mxu0 %v387
        %423 = vmatmul.bf16.gmra.mxu0 %v381
        %v424 = vpop.f32.mrf.mxu0
        %v425 = vadd.f32 %v377, %v424
        %v426 = vpop.f32.mrf.mxu0
        %427 = vdwg.mxu0
        %s428 = scalar_lea.vmem %s2, 8
        %v429 = vld [vmem:[%s428] sm:$0xf]
        %430 = vrot.lane.b32.xlu0 %v302, 126
        %v431 = vpop.permute.xlu0 %430
        %432 = vrot.lane.b32.xlu0 %v304, 126
        %v433 = vpop.permute.xlu0 %432
        %434 = vrot.lane.b32.xlu0 %v306, 126
        %v435 = vpop.permute.xlu0 %434
        %436 = vrot.lane.b32.xlu0 %v310, 126
        %v437 = vpop.permute.xlu0 %436
        %vm438 = vcmask 1031168
        %v439 = vsel %vm438, %v431, %v433
        %v440 = vsel %vm438, %v433, %v435
        %v441 = vsel %vm438, %v435, %v437
        %v443 = vsel %vm327, %v429, 0
        %v446 = vsel %vm331, %v439, 0
        %v449 = vsel %vm331, %v440, 0
        %v452 = vsel %vm331, %v441, 0
        %454 = vmatpush.bf16.msra.mxu0 0
        %455 = vmatpush.bf16.msra.mxu0 0
        %456 = vmatpush.bf16.msra.mxu0 0
        %457 = vmatpush.bf16.msra.mxu0 0
        %458 = vmatpush.bf16.msra.mxu0 0
        %459 = vmatpush.bf16.msra.mxu0 0
        %460 = vmatpush.bf16.msra.mxu0 0
        %461 = vmatpush.bf16.msra.mxu0 %v446
        %462 = vmatmul.bf16.gmra.mxu0 %v443
        %v463 = vpop.f32.mrf.mxu0
        %v464 = vadd.f32 0.0, %v463
        %v465 = vpop.f32.mrf.mxu0
        %466 = vdwg.mxu0
        %467 = vmatpush.bf16.msra.mxu0 0
        %468 = vmatpush.bf16.msra.mxu0 0
        %469 = vmatpush.bf16.msra.mxu0 0
        %470 = vmatpush.bf16.msra.mxu0 0
        %471 = vmatpush.bf16.msra.mxu0 0
        %472 = vmatpush.bf16.msra.mxu0 0
        %473 = vmatpush.bf16.msra.mxu0 0
        %474 = vmatpush.bf16.msra.mxu0 %v449
        %475 = vmatmul.bf16.gmra.mxu0 %v443
        %v476 = vpop.f32.mrf.mxu0
        %v477 = vadd.f32 0.0, %v476
        %v478 = vpop.f32.mrf.mxu0
        %479 = vdwg.mxu0
        %480 = vmatpush.bf16.msra.mxu0 0
        %481 = vmatpush.bf16.msra.mxu0 0
        %482 = vmatpush.bf16.msra.mxu0 0
        %483 = vmatpush.bf16.msra.mxu0 0
        %484 = vmatpush.bf16.msra.mxu0 0
        %485 = vmatpush.bf16.msra.mxu0 0
        %486 = vmatpush.bf16.msra.mxu0 0
        %487 = vmatpush.bf16.msra.mxu0 %v452
        %488 = vmatmul.bf16.gmra.mxu0 %v443
        %v489 = vpop.f32.mrf.mxu0
        %v490 = vadd.f32 0.0, %v489
        %v491 = vpop.f32.mrf.mxu0
        %492 = vdwg.mxu0
        %v493 = vadd.f32 %v399, %v464
        %v494 = vadd.f32 %v412, %v477
        %v495 = vadd.f32 %v425, %v490
        %s496 = scalar_lea.vmem %s2, 12
        %v497 = vld [vmem:[%s496] sm:$0xf]
        %498 = vrot.lane.b32.xlu0 %v302, 110
        %v499 = vpop.permute.xlu0 %498
        %500 = vrot.lane.b32.xlu0 %v304, 110
        %v501 = vpop.permute.xlu0 %500
        %502 = vrot.lane.b32.xlu0 %v306, 110
        %v503 = vpop.permute.xlu0 %502
        %504 = vrot.lane.b32.xlu0 %v310, 110
        %v505 = vpop.permute.xlu0 %504
        %vm506 = vcmask 900096
        %v507 = vsel %vm506, %v499, %v501
        %v508 = vsel %vm506, %v501, %v503
        %v509 = vsel %vm506, %v503, %v505
        %v511 = vsel %vm327, %v497, 0
        %v514 = vsel %vm331, %v507, 0
        %v517 = vsel %vm331, %v508, 0
        %v520 = vsel %vm331, %v509, 0
        %522 = vmatpush.bf16.msra.mxu0 0
        %523 = vmatpush.bf16.msra.mxu0 0
        %524 = vmatpush.bf16.msra.mxu0 0
        %525 = vmatpush.bf16.msra.mxu0 0
        %526 = vmatpush.bf16.msra.mxu0 0
        %527 = vmatpush.bf16.msra.mxu0 0
        %528 = vmatpush.bf16.msra.mxu0 0
        %529 = vmatpush.bf16.msra.mxu0 %v514
        %530 = vmatmul.bf16.gmra.mxu0 %v511
        %v531 = vpop.f32.mrf.mxu0
        %v532 = vadd.f32 0.0, %v531
        %v533 = vpop.f32.mrf.mxu0
        %534 = vdwg.mxu0
        %535 = vmatpush.bf16.msra.mxu0 0
        %536 = vmatpush.bf16.msra.mxu0 0
        %537 = vmatpush.bf16.msra.mxu0 0
        %538 = vmatpush.bf16.msra.mxu0 0
        %539 = vmatpush.bf16.msra.mxu0 0
        %540 = vmatpush.bf16.msra.mxu0 0
        %541 = vmatpush.bf16.msra.mxu0 0
        %542 = vmatpush.bf16.msra.mxu0 %v517
        %543 = vmatmul.bf16.gmra.mxu0 %v511
        %v544 = vpop.f32.mrf.mxu0
        %v545 = vadd.f32 0.0, %v544
        %v546 = vpop.f32.mrf.mxu0
        %547 = vdwg.mxu0
        %548 = vmatpush.bf16.msra.mxu0 0
        %549 = vmatpush.bf16.msra.mxu0 0
        %550 = vmatpush.bf16.msra.mxu0 0
        %551 = vmatpush.bf16.msra.mxu0 0
        %552 = vmatpush.bf16.msra.mxu0 0
        %553 = vmatpush.bf16.msra.mxu0 0
        %554 = vmatpush.bf16.msra.mxu0 0
        %555 = vmatpush.bf16.msra.mxu0 %v520
        %556 = vmatmul.bf16.gmra.mxu0 %v511
        %v557 = vpop.f32.mrf.mxu0
        %v558 = vadd.f32 0.0, %v557
        %v559 = vpop.f32.mrf.mxu0
        %560 = vdwg.mxu0
        %v561 = vadd.f32 %v493, %v532
        %v562 = vadd.f32 %v494, %v545
        %v563 = vadd.f32 %v495, %v558
        %s564 = scalar_lea.vmem %s2, 16
        %v565 = vld [vmem:[%s564] sm:$0xf]
        %566 = vrot.lane.b32.xlu0 %v302, 109
        %v567 = vpop.permute.xlu0 %566
        %568 = vrot.lane.b32.xlu0 %v304, 109
        %v569 = vpop.permute.xlu0 %568
        %570 = vrot.lane.b32.xlu0 %v306, 109
        %v571 = vpop.permute.xlu0 %570
        %572 = vrot.lane.b32.xlu0 %v310, 109
        %v573 = vpop.permute.xlu0 %572
        %vm574 = vcmask 891904
        %v575 = vsel %vm574, %v567, %v569
        %v576 = vsel %vm574, %v569, %v571
        %v577 = vsel %vm574, %v571, %v573
        %v579 = vsel %vm327, %v565, 0
        %v582 = vsel %vm331, %v575, 0
        %v585 = vsel %vm331, %v576, 0
        %v588 = vsel %vm331, %v577, 0
        %590 = vmatpush.bf16.msra.mxu0 0
        %591 = vmatpush.bf16.msra.mxu0 0
        %592 = vmatpush.bf16.msra.mxu0 0
        %593 = vmatpush.bf16.msra.mxu0 0
        %594 = vmatpush.bf16.msra.mxu0 0
        %595 = vmatpush.bf16.msra.mxu0 0
        %596 = vmatpush.bf16.msra.mxu0 0
        %597 = vmatpush.bf16.msra.mxu0 %v582
        %598 = vmatmul.bf16.gmra.mxu0 %v579
        %v599 = vpop.f32.mrf.mxu0
        %v600 = vadd.f32 0.0, %v599
        %v601 = vpop.f32.mrf.mxu0
        %602 = vdwg.mxu0
        %603 = vmatpush.bf16.msra.mxu0 0
        %604 = vmatpush.bf16.msra.mxu0 0
        %605 = vmatpush.bf16.msra.mxu0 0
        %606 = vmatpush.bf16.msra.mxu0 0
        %607 = vmatpush.bf16.msra.mxu0 0
        %608 = vmatpush.bf16.msra.mxu0 0
        %609 = vmatpush.bf16.msra.mxu0 0
        %610 = vmatpush.bf16.msra.mxu0 %v585
        %611 = vmatmul.bf16.gmra.mxu0 %v579
        %v612 = vpop.f32.mrf.mxu0
        %v613 = vadd.f32 0.0, %v612
        %v614 = vpop.f32.mrf.mxu0
        %615 = vdwg.mxu0
        %616 = vmatpush.bf16.msra.mxu0 0
        %617 = vmatpush.bf16.msra.mxu0 0
        %618 = vmatpush.bf16.msra.mxu0 0
        %619 = vmatpush.bf16.msra.mxu0 0
        %620 = vmatpush.bf16.msra.mxu0 0
        %621 = vmatpush.bf16.msra.mxu0 0
        %622 = vmatpush.bf16.msra.mxu0 0
        %623 = vmatpush.bf16.msra.mxu0 %v588
        %624 = vmatmul.bf16.gmra.mxu0 %v579
        %v625 = vpop.f32.mrf.mxu0
        %v626 = vadd.f32 0.0, %v625
        %v627 = vpop.f32.mrf.mxu0
        %628 = vdwg.mxu0
        %v629 = vadd.f32 %v561, %v600
        %v630 = vadd.f32 %v562, %v613
        %v631 = vadd.f32 %v563, %v626
        %s632 = scalar_lea.vmem %s2, 20
        %v633 = vld [vmem:[%s632] sm:$0xf]
        %634 = vrot.lane.b32.xlu0 %v302, 108
        %v635 = vpop.permute.xlu0 %634
        %636 = vrot.lane.b32.xlu0 %v304, 108
        %v637 = vpop.permute.xlu0 %636
        %638 = vrot.lane.b32.xlu0 %v306, 108
        %v639 = vpop.permute.xlu0 %638
        %640 = vrot.lane.b32.xlu0 %v310, 108
        %v641 = vpop.permute.xlu0 %640
        %vm642 = vcmask 883712
        %v643 = vsel %vm642, %v635, %v637
        %v644 = vsel %vm642, %v637, %v639
        %v645 = vsel %vm642, %v639, %v641
        %v647 = vsel %vm327, %v633, 0
        %v650 = vsel %vm331, %v643, 0
        %v653 = vsel %vm331, %v644, 0
        %v656 = vsel %vm331, %v645, 0
        %658 = vmatpush.bf16.msra.mxu0 0
        %659 = vmatpush.bf16.msra.mxu0 0
        %660 = vmatpush.bf16.msra.mxu0 0
        %661 = vmatpush.bf16.msra.mxu0 0
        %662 = vmatpush.bf16.msra.mxu0 0
        %663 = vmatpush.bf16.msra.mxu0 0
        %664 = vmatpush.bf16.msra.mxu0 0
        %665 = vmatpush.bf16.msra.mxu0 %v650
        %666 = vmatmul.bf16.gmra.mxu0 %v647
        %v667 = vpop.f32.mrf.mxu0
        %v668 = vadd.f32 0.0, %v667
        %v669 = vpop.f32.mrf.mxu0
        %670 = vdwg.mxu0
        %671 = vmatpush.bf16.msra.mxu0 0
        %672 = vmatpush.bf16.msra.mxu0 0
        %673 = vmatpush.bf16.msra.mxu0 0
        %674 = vmatpush.bf16.msra.mxu0 0
        %675 = vmatpush.bf16.msra.mxu0 0
        %676 = vmatpush.bf16.msra.mxu0 0
        %677 = vmatpush.bf16.msra.mxu0 0
        %678 = vmatpush.bf16.msra.mxu0 %v653
        %679 = vmatmul.bf16.gmra.mxu0 %v647
        %v680 = vpop.f32.mrf.mxu0
        %v681 = vadd.f32 0.0, %v680
        %v682 = vpop.f32.mrf.mxu0
        %683 = vdwg.mxu0
        %684 = vmatpush.bf16.msra.mxu0 0
        %685 = vmatpush.bf16.msra.mxu0 0
        %686 = vmatpush.bf16.msra.mxu0 0
        %687 = vmatpush.bf16.msra.mxu0 0
        %688 = vmatpush.bf16.msra.mxu0 0
        %689 = vmatpush.bf16.msra.mxu0 0
        %690 = vmatpush.bf16.msra.mxu0 0
        %691 = vmatpush.bf16.msra.mxu0 %v656
        %692 = vmatmul.bf16.gmra.mxu0 %v647
        %v693 = vpop.f32.mrf.mxu0
        %v694 = vadd.f32 0.0, %v693
        %v695 = vpop.f32.mrf.mxu0
        %696 = vdwg.mxu0
        %v697 = vadd.f32 %v629, %v668
        %v698 = vadd.f32 %v630, %v681
        %v699 = vadd.f32 %v631, %v694
        %s700 = scalar_lea.vmem %s2, 24
        %v701 = vld [vmem:[%s700] sm:$0xf]
        %702 = vrot.lane.b32.xlu0 %v302, 92
        %v703 = vpop.permute.xlu0 %702
        %704 = vrot.lane.b32.xlu0 %v304, 92
        %v705 = vpop.permute.xlu0 %704
        %706 = vrot.lane.b32.xlu0 %v306, 92
        %v707 = vpop.permute.xlu0 %706
        %708 = vrot.lane.b32.xlu0 %v310, 92
        %v709 = vpop.permute.xlu0 %708
        %vm710 = vcmask 752640
        %v711 = vsel %vm710, %v703, %v705
        %v712 = vsel %vm710, %v705, %v707
        %v713 = vsel %vm710, %v707, %v709
        %v715 = vsel %vm327, %v701, 0
        %v718 = vsel %vm331, %v711, 0
        %v721 = vsel %vm331, %v712, 0
        %v724 = vsel %vm331, %v713, 0
        %726 = vmatpush.bf16.msra.mxu0 0
        %727 = vmatpush.bf16.msra.mxu0 0
        %728 = vmatpush.bf16.msra.mxu0 0
        %729 = vmatpush.bf16.msra.mxu0 0
        %730 = vmatpush.bf16.msra.mxu0 0
        %731 = vmatpush.bf16.msra.mxu0 0
        %732 = vmatpush.bf16.msra.mxu0 0
        %733 = vmatpush.bf16.msra.mxu0 %v718
        %734 = vmatmul.bf16.gmra.mxu0 %v715
        %v735 = vpop.f32.mrf.mxu0
        %v736 = vadd.f32 0.0, %v735
        %v737 = vpop.f32.mrf.mxu0
        %738 = vdwg.mxu0
        %739 = vmatpush.bf16.msra.mxu0 0
        %740 = vmatpush.bf16.msra.mxu0 0
        %741 = vmatpush.bf16.msra.mxu0 0
        %742 = vmatpush.bf16.msra.mxu0 0
        %743 = vmatpush.bf16.msra.mxu0 0
        %744 = vmatpush.bf16.msra.mxu0 0
        %745 = vmatpush.bf16.msra.mxu0 0
        %746 = vmatpush.bf16.msra.mxu0 %v721
        %747 = vmatmul.bf16.gmra.mxu0 %v715
        %v748 = vpop.f32.mrf.mxu0
        %v749 = vadd.f32 0.0, %v748
        %v750 = vpop.f32.mrf.mxu0
        %751 = vdwg.mxu0
        %752 = vmatpush.bf16.msra.mxu0 0
        %753 = vmatpush.bf16.msra.mxu0 0
        %754 = vmatpush.bf16.msra.mxu0 0
        %755 = vmatpush.bf16.msra.mxu0 0
        %756 = vmatpush.bf16.msra.mxu0 0
        %757 = vmatpush.bf16.msra.mxu0 0
        %758 = vmatpush.bf16.msra.mxu0 0
        %759 = vmatpush.bf16.msra.mxu0 %v724
        %760 = vmatmul.bf16.gmra.mxu0 %v715
        %v761 = vpop.f32.mrf.mxu0
        %v762 = vadd.f32 0.0, %v761
        %v763 = vpop.f32.mrf.mxu0
        %764 = vdwg.mxu0
        %v765 = vadd.f32 %v697, %v736
        %v766 = vadd.f32 %v698, %v749
        %v767 = vadd.f32 %v699, %v762
        %s768 = scalar_lea.vmem %s2, 28
        %v769 = vld [vmem:[%s768] sm:$0xf]
        %770 = vrot.lane.b32.xlu0 %v302, 91
        %v771 = vpop.permute.xlu0 %770
        %772 = vrot.lane.b32.xlu0 %v304, 91
        %v773 = vpop.permute.xlu0 %772
        %774 = vrot.lane.b32.xlu0 %v306, 91
        %v775 = vpop.permute.xlu0 %774
        %776 = vrot.lane.b32.xlu0 %v310, 91
        %v777 = vpop.permute.xlu0 %776
        %vm778 = vcmask 744448
        %v779 = vsel %vm778, %v771, %v773
        %v780 = vsel %vm778, %v773, %v775
        %v781 = vsel %vm778, %v775, %v777
        %v783 = vsel %vm327, %v769, 0
        %v786 = vsel %vm331, %v779, 0
        %v789 = vsel %vm331, %v780, 0
        %v792 = vsel %vm331, %v781, 0
        %794 = vmatpush.bf16.msra.mxu0 0
        %795 = vmatpush.bf16.msra.mxu0 0
        %796 = vmatpush.bf16.msra.mxu0 0
        %797 = vmatpush.bf16.msra.mxu0 0
        %798 = vmatpush.bf16.msra.mxu0 0
        %799 = vmatpush.bf16.msra.mxu0 0
        %800 = vmatpush.bf16.msra.mxu0 0
        %801 = vmatpush.bf16.msra.mxu0 %v786
        %802 = vmatmul.bf16.gmra.mxu0 %v783
        %v803 = vpop.f32.mrf.mxu0
        %v804 = vadd.f32 0.0, %v803
        %v805 = vpop.f32.mrf.mxu0
        %806 = vdwg.mxu0
        %807 = vmatpush.bf16.msra.mxu0 0
        %808 = vmatpush.bf16.msra.mxu0 0
        %809 = vmatpush.bf16.msra.mxu0 0
        %810 = vmatpush.bf16.msra.mxu0 0
        %811 = vmatpush.bf16.msra.mxu0 0
        %812 = vmatpush.bf16.msra.mxu0 0
        %813 = vmatpush.bf16.msra.mxu0 0
        %814 = vmatpush.bf16.msra.mxu0 %v789
        %815 = vmatmul.bf16.gmra.mxu0 %v783
        %v816 = vpop.f32.mrf.mxu0
        %v817 = vadd.f32 0.0, %v816
        %v818 = vpop.f32.mrf.mxu0
        %819 = vdwg.mxu0
        %820 = vmatpush.bf16.msra.mxu0 0
        %821 = vmatpush.bf16.msra.mxu0 0
        %822 = vmatpush.bf16.msra.mxu0 0
        %823 = vmatpush.bf16.msra.mxu0 0
        %824 = vmatpush.bf16.msra.mxu0 0
        %825 = vmatpush.bf16.msra.mxu0 0
        %826 = vmatpush.bf16.msra.mxu0 0
        %827 = vmatpush.bf16.msra.mxu0 %v792
        %828 = vmatmul.bf16.gmra.mxu0 %v783
        %v829 = vpop.f32.mrf.mxu0
        %v830 = vadd.f32 0.0, %v829
        %v831 = vpop.f32.mrf.mxu0
        %832 = vdwg.mxu0
        %v833 = vadd.f32 %v765, %v804
        %v834 = vadd.f32 %v766, %v817
        %v835 = vadd.f32 %v767, %v830
        %s836 = scalar_lea.vmem %s2, 32
        %v837 = vld [vmem:[%s836] sm:$0xf]
        %838 = vrot.lane.b32.xlu0 %v302, 90
        %v839 = vpop.permute.xlu0 %838
        %840 = vrot.lane.b32.xlu0 %v304, 90
        %v841 = vpop.permute.xlu0 %840
        %842 = vrot.lane.b32.xlu0 %v306, 90
        %v843 = vpop.permute.xlu0 %842
        %844 = vrot.lane.b32.xlu0 %v310, 90
        %v845 = vpop.permute.xlu0 %844
        %vm846 = vcmask 736256
        %v847 = vsel %vm846, %v839, %v841
        %v848 = vsel %vm846, %v841, %v843
        %v849 = vsel %vm846, %v843, %v845
        %v851 = vsel %vm327, %v837, 0
        %v854 = vsel %vm331, %v847, 0
        %v857 = vsel %vm331, %v848, 0
        %v860 = vsel %vm331, %v849, 0
        %862 = vmatpush.bf16.msra.mxu0 0
        %863 = vmatpush.bf16.msra.mxu0 0
        %864 = vmatpush.bf16.msra.mxu0 0
        %865 = vmatpush.bf16.msra.mxu0 0
        %866 = vmatpush.bf16.msra.mxu0 0
        %867 = vmatpush.bf16.msra.mxu0 0
        %868 = vmatpush.bf16.msra.mxu0 0
        %869 = vmatpush.bf16.msra.mxu0 %v854
        %870 = vmatmul.bf16.gmra.mxu0 %v851
        %v871 = vpop.f32.mrf.mxu0
        %v872 = vadd.f32 0.0, %v871
        %v873 = vpop.f32.mrf.mxu0
        %874 = vdwg.mxu0
        %875 = vmatpush.bf16.msra.mxu0 0
        %876 = vmatpush.bf16.msra.mxu0 0
        %877 = vmatpush.bf16.msra.mxu0 0
        %878 = vmatpush.bf16.msra.mxu0 0
        %879 = vmatpush.bf16.msra.mxu0 0
        %880 = vmatpush.bf16.msra.mxu0 0
        %881 = vmatpush.bf16.msra.mxu0 0
        %882 = vmatpush.bf16.msra.mxu0 %v857
        %883 = vmatmul.bf16.gmra.mxu0 %v851
        %v884 = vpop.f32.mrf.mxu0
        %v885 = vadd.f32 0.0, %v884
        %v886 = vpop.f32.mrf.mxu0
        %887 = vdwg.mxu0
        %888 = vmatpush.bf16.msra.mxu0 0
        %889 = vmatpush.bf16.msra.mxu0 0
        %890 = vmatpush.bf16.msra.mxu0 0
        %891 = vmatpush.bf16.msra.mxu0 0
        %892 = vmatpush.bf16.msra.mxu0 0
        %893 = vmatpush.bf16.msra.mxu0 0
        %894 = vmatpush.bf16.msra.mxu0 0
        %895 = vmatpush.bf16.msra.mxu0 %v860
        %896 = vmatmul.bf16.gmra.mxu0 %v851
        %v897 = vpop.f32.mrf.mxu0
        %v898 = vadd.f32 0.0, %v897
        %v899 = vpop.f32.mrf.mxu0
        %900 = vdwg.mxu0
        %v901 = vadd.f32 %v833, %v872
        %v902 = vadd.f32 %v834, %v885
        %v903 = vadd.f32 %v835, %v898
        %v904 = vld [vmem:[%s3] sm:$0xff]
        %906 = vset.pattern.permute.xlu0 0
        %907 = vperm.xlu0 %906, %v904
        %v908 = vpop.permute.xlu0 %907
        %v910 = vmul.f32 %v901, %v908
        %v911 = vmul.f32 %v902, %v908
        %v912 = vmul.f32 %v903, %v908
        %v913 = vld [vmem:[%s4] sm:$0xff]
        %915 = vset.pattern.permute.xlu0 0
        %916 = vperm.xlu0 %915, %v913
        %v917 = vpop.permute.xlu0 %916
        %v919 = vadd.f32 %v910, %v917
        %v920 = vadd.f32 %v911, %v917
        %v921 = vadd.f32 %v912, %v917
        %v922 = vmax.f32 %v919, 0.0
        %v923 = vmax.f32 %v920, 0.0
        %v924 = vmax.f32 %v921, 0.0
        %925 = vst [vmem:[%s273] sm:$0xff] %v922
        %926 = vst [vmem:[%s273 + $0x8] sm:$0xff] %v923
        %927 = vst [vmem:[%s273 + $0x10] sm:$0xff] %v924
        %s928 = sand.u32 %s162, 1
        %s929 = scalar_lea.sflag [#allocation3], %s928
        %s930 = sand.u32 %s162, 1
        %s931 = smul.addr %s930, 24
        %s932 = scalar_lea.vmem [#allocation2], %s931
        // Predicated region
        $region41: #{tpu_custom_call.1} parent=39 // pred_check
          %p933 = pneg %p172
        $region42: #{tpu_custom_call.1} parent=39 // pred_check_branch
          %935 = sbr.rel (%p933) target = $region44
        $region43: #{tpu_custom_call.1} parent=39 // pred_region
          %s936 = smul.u32 3, %s24
          %938 = vsyncadd %s929, 0
          %s939 = smul.addr %s23, 3
          %s940 = sadd.s32 %s936, %s939
          %s941 = smul.addr %s940, 8
          %s942 = scalar_lea.hbm %s5, %s941
          %s944 = sshll.u32 %s932, 4
          %s945 = int_to_ptr.vmem [resolvable:$true] %s944
          %s946 = sshll.u32 %s942, 4
          %s947 = int_to_ptr.hbm [resolvable:$true] %s946
          %949 = dma.vmem_to_hbm [thread:$0]  %s945, 384, %s947, %s929
        $region44: #{tpu_custom_call.1} parent=39 // pred_fallthru
          _
      $region40: #{tpu_custom_call.1} parent=5 // pred_fallthru
        _
      %p950 = scmp.le.s32.totalorder 2, %s14
      // Predicated region
      $region45: #{tpu_custom_call.1} parent=5 // pred_check
        %p951 = pneg %p950
      $region46: #{tpu_custom_call.1} parent=5 // pred_check_branch
        %953 = sbr.rel (%p951) target = $region48
      $region47: #{tpu_custom_call.1} parent=5 // pred_region
        %s954 = ssub.s32 %s14, 2
        // Predicated region
        $region49: #{tpu_custom_call.1} parent=47 // pred_check
          %p955 = pneg %p178
        $region50: #{tpu_custom_call.1} parent=47 // pred_check_branch
          %957 = sbr.rel (%p955) target = $region52
        $region51: #{tpu_custom_call.1} parent=47 // pred_region
          %s958 = sand.u32 %s163, 1
          %s959 = scalar_lea.sflag [#allocation3], %s958
          %s960 = sand.u32 %s163, 1
          %s961 = smul.addr %s960, 24
          %s962 = scalar_lea.vmem [#allocation2], %s961
          %964 = dma.done %s959, 384
        $region52: #{tpu_custom_call.1} parent=47 // pred_fallthru
          _
      $region48: #{tpu_custom_call.1} parent=5 // pred_fallthru
        _
    $region6: #{tpu_custom_call.1} parent=1 // loop_footer
      %s18 = sadd.s32 1, %s14
    $region7: #{tpu_custom_call.1} parent=1 // loop_footer_branch
      %13 = sbr.rel target = $region3
    $region8: #{tpu_custom_call.1} parent=1 // loop_exit
      _
    %965 = vsyncpa [#allocation3], 1
    %s966 = scalar_lea.sflag [#allocation3], 1
    %967 = vsyncpa %s966, 1

</llo_original>
